<compile_context>
chip_gen: v5e
topology: v5e:2x2
jax: 0.10.0
libtpu: 0.0.40
codegen_flags: <defaults>
</compile_context>

<pallas_src>
import functools

import jax
import jax.numpy as jnp
from jax import lax
from jax.experimental import pallas as pl
from jax.experimental.pallas import tpu as pltpu

_MIB = 1024 * 1024


# ----------------------------- Pallas LayerNorm ------------------------------

def _layernorm_kernel(x_ref, gamma_ref, beta_ref, o_ref, *, eps: float, d: int):
    """Per-row LayerNorm with scalar affine params (PyTorch-faithful)."""
    xf = x_ref[...].astype(jnp.float32)                     # (row_tile, D)
    # One traversal for both statistics, accumulated in f32.
    sum_x = jnp.sum(xf, axis=-1, keepdims=True)             # (row_tile, 1)
    sum_x2 = jnp.sum(xf * xf, axis=-1, keepdims=True)       # (row_tile, 1)
    mu = sum_x * jnp.float32(1.0 / d)
    # Unbiased variance (Bessel's correction), matching torch.Tensor.std():
    #   sum((x - mu)^2) = sum(x^2) - mu * sum(x)
    var = (sum_x2 - mu * sum_x) * jnp.float32(1.0 / (d - 1))
    var = jnp.maximum(var, jnp.float32(0.0))                 # guard cancellation
    inv = lax.rsqrt(var + jnp.float32(eps))                  # EUP rsqrt
    # Fold gamma into the per-row scale: o = (x - mu) * (inv*gamma) + beta.
    scaled = inv * gamma_ref[0]                               # (row_tile, 1)
    o_ref[...] = ((xf - mu) * scaled + beta_ref[0]).astype(o_ref.dtype)


# ------------------------------- tiling policy --------------------------------

def _sublane_multiple(dtype) -> int:
    """Rows per packed sublane group: 8 for f32, 16 for bf16/f16, 32 for int8/fp8."""
    itemsize = jnp.dtype(dtype).itemsize
    return max(8, 32 // itemsize)


def _vmem_capacity_bytes() -> int:
    """Physical VMEM of the current TPU; conservative (v7x-sized) fallback."""
    try:
        return int(pltpu.get_tpu_info().vmem_capacity_bytes)
    except Exception:
        return 64 * _MIB


def _pick_tiling(rows: int, d: int, dtype, row_tile: int | None = None):
    """Return (row_tile, vmem_limit_bytes) keyed off the TPU generation.

    Budgets 2x double-buffered input + 2x double-buffered output blocks plus
    ~3 full-tile f32 intermediates (upcast x, fused x*x reduce, f32 result
    before the downcast store)."""
    cap = _vmem_capacity_bytes()
    itemsize = jnp.dtype(dtype).itemsize
    sub = _sublane_multiple(dtype)

    if cap >= 100 * _MIB:                 # v5e / v6e: 128 MiB physical VMEM
        target_in_bytes = 8 * _MIB
        limit_cap = 96 * _MIB
    else:                                 # v7x: 64 MiB physical VMEM
        target_in_bytes = 4 * _MIB
        limit_cap = 48 * _MIB

    # Bytes of VMEM per tiled row for one in-flight grid step.
    per_row = (2 + 2) * d * itemsize + 3 * d * 4

    rows_rounded = ((rows + sub - 1) // sub) * sub
    if row_tile is None:
        t = max(1, target_in_bytes // max(1, d * itemsize))
        # Keep the total footprint <= ~60% of the limit cap (Mosaic scratch headroom).
        t = min(t, max(1, (limit_cap * 6 // 10) // per_row))
        t = min(t, rows_rounded)
    else:
        t = min(int(row_tile), rows_rounded) if rows_rounded else int(row_tile)
    t = max(sub, (t // sub) * sub)        # sublane-aligned

    footprint = t * per_row
    vmem_limit = int(min(limit_cap, max(32 * _MIB, footprint + 16 * _MIB)))
    return t, vmem_limit


# --------------------------------- wrapper -------------------------------------

def layernorm_pallas(x: jax.Array, gamma: jax.Array, beta: jax.Array,
                     eps: float = 1e-6, *, row_tile: int | None = None,
                     vmem_limit_bytes: int | None = None) -> jax.Array:
    """x: (..., D); gamma, beta: shape-(1,) scalar params (as in the PyTorch module).

    Normalization is over the last axis D (lane axis). For the lane-dense fast
    path D should be a multiple of 128; any D >= 2 is legal."""
    orig_shape = x.shape
    d = int(orig_shape[-1])
    assert d >= 2, "LayerNorm with unbiased std requires D >= 2 (divide by D-1)."

    rows = 1
    for s in orig_shape[:-1]:
        rows *= int(s)
    x2 = x.reshape(rows, d)

    row_tile, auto_limit = _pick_tiling(rows, d, x.dtype, row_tile)
    if vmem_limit_bytes is None:
        vmem_limit_bytes = auto_limit

    # No host-side padding: the ragged last block is handled by Pallas (padded
    # rows may compute garbage internally, but their writes are masked and each
    # row's reduction is independent, so valid rows are unaffected).
    grid = (pl.cdiv(rows, row_tile),)

    gamma = jnp.asarray(gamma, jnp.float32).reshape(1)
    beta = jnp.asarray(beta, jnp.float32).reshape(1)

    kernel = functools.partial(_layernorm_kernel, eps=float(eps), d=d)
    out = pl.pallas_call(
        kernel,
        out_shape=jax.ShapeDtypeStruct((rows, d), x.dtype),
        grid_spec=pltpu.PrefetchScalarGridSpec(
            num_scalar_prefetch=0,
            grid=grid,
            in_specs=[
                pl.BlockSpec((row_tile, d), lambda i: (i, 0)),
                pl.BlockSpec(memory_space=pltpu.MemorySpace.SMEM),  # gamma (1,)
                pl.BlockSpec(memory_space=pltpu.MemorySpace.SMEM),  # beta  (1,)
            ],
            out_specs=pl.BlockSpec((row_tile, d), lambda i: (i, 0)),
        ),
        compiler_params=pltpu.CompilerParams(
            dimension_semantics=("parallel",),     # shards rows across TCs on v7x
            vmem_limit_bytes=int(vmem_limit_bytes),
        ),
    )(x2, gamma, beta)

    return out.reshape(orig_shape)


# ------------------------------ Module mirror ----------------------------------

class LayerNorm:
    """JAX mirror of the PyTorch LayerNorm module (scalar gamma/beta)."""

    def __init__(self, eps: float = 1e-6):
        self.eps = eps
        # Matches nn.Parameter(torch.ones(1)) / nn.Parameter(torch.zeros(1))
        self.gamma = jnp.ones((1,), dtype=jnp.float32)
        self.beta = jnp.zeros((1,), dtype=jnp.float32)

    def __call__(self, x):
        return layernorm_pallas(x, self.gamma, self.beta, self.eps)


# ----------------------------- reference (no Pallas) ----------------------------

def _layernorm_ref(x, gamma, beta, eps=1e-6):
    x = x.astype(jnp.float32)
    mu = jnp.mean(x, axis=-1, keepdims=True)
    sigma = jnp.std(x, axis=-1, keepdims=True, ddof=1)       # unbiased, like torch
    norm = (x - mu) / jnp.sqrt(sigma ** 2 + eps)
    return gamma[0] * norm + beta[0]


# ----------------------------------- main ---------------------------------------

if __name__ == "__main__":
    key = jax.random.PRNGKey(0)

    # small, lane-dense demo shape (batch=2, seq=8, d_model=128)
    B, S, D = 2, 8, 128
    x = jax.random.normal(key, (B, S, D), dtype=jnp.float32)

    ln = LayerNorm()
    out = jax.block_until_ready(ln(x))
    ref = _layernorm_ref(x, ln.gamma, ln.beta, ln.eps)
    assert out.shape == (B, S, D)
    assert jnp.allclose(out, ref.astype(out.dtype), atol=1e-5, rtol=1e-5), \
        "mismatch vs reference (divisible rows)"

    # row count that does NOT divide the tile (ragged last block), f32
    x2 = jax.random.normal(jax.random.PRNGKey(1), (3, 5, D), dtype=jnp.float32)
    out2 = jax.block_until_ready(
        layernorm_pallas(x2, ln.gamma, ln.beta, ln.eps, row_tile=8))
    ref2 = _layernorm_ref(x2, ln.gamma, ln.beta, ln.eps)
    assert jnp.allclose(out2, ref2.astype(out2.dtype), atol=1e-5, rtol=1e-5), \
        "mismatch vs reference (ragged rows, f32)"

    # bf16 + ragged rows: locks in the masked-writeback assumption for packed dtypes
    x3 = jax.random.normal(jax.random.PRNGKey(2), (3, 5, D), dtype=jnp.bfloat16)
    out3 = jax.block_until_ready(
        layernorm_pallas(x3, ln.gamma, ln.beta, ln.eps, row_tile=16))
    ref3 = _layernorm_ref(x3, ln.gamma, ln.beta, ln.eps)
    assert out3.dtype == jnp.bfloat16
    assert jnp.allclose(out3.astype(jnp.float32), ref3, atol=5e-2, rtol=5e-2), \
        "mismatch vs reference (ragged rows, bf16)"

    print("KERNEL_OK")
</pallas_src>

<mosaic_0001>
module attributes {stable_mosaic.version = 11 : i64} {
  func.func @_layernorm_kernel(%arg0: i32, %arg1: memref<16x128xf32, #tpu.memory_space<vmem>>, %arg2: memref<1xf32, #tpu.memory_space<smem>>, %arg3: memref<1xf32, #tpu.memory_space<smem>>, %arg4: memref<16x128xf32, #tpu.memory_space<vmem>>) attributes {dimension_semantics = [#tpu.dimension_semantics<parallel>], iteration_bounds = array<i64: 1>, scalar_prefetch = 0 : i64, scratch_operands = 0 : i64, tpu.core_type = #tpu.core_type<tc>, window_params = [{transform_indices = @transform_0, window_bounds = array<i64: 16, 128>}, {transform_indices = @transform_1, window_bounds = array<i64: 1>}, {transform_indices = @transform_2, window_bounds = array<i64: 1>}, {transform_indices = @transform_3, window_bounds = array<i64: 16, 128>}]} {
    %c0 = arith.constant 0 : index
    %c0_0 = arith.constant 0 : index
    %0 = vector.load %arg1[%c0, %c0_0] : memref<16x128xf32, #tpu.memory_space<vmem>>, vector<16x128xf32>
    %cst = arith.constant dense<0.000000e+00> : vector<16xf32>
    %1 = vector.multi_reduction <add>, %0, %cst [1] : vector<16x128xf32> to vector<16xf32>
    %2 = vector.shape_cast %1 : vector<16xf32> to vector<16x1xf32>
    %3 = arith.mulf %0, %0 : vector<16x128xf32>
    %cst_1 = arith.constant dense<0.000000e+00> : vector<16xf32>
    %4 = vector.multi_reduction <add>, %3, %cst_1 [1] : vector<16x128xf32> to vector<16xf32>
    %5 = vector.shape_cast %4 : vector<16xf32> to vector<16x1xf32>
    %cst_2 = arith.constant 7.812500e-03 : f32
    %6 = vector.broadcast %cst_2 : f32 to vector<16x1xf32>
    %7 = arith.mulf %2, %6 : vector<16x1xf32>
    %8 = arith.mulf %7, %2 : vector<16x1xf32>
    %9 = arith.subf %5, %8 : vector<16x1xf32>
    %cst_3 = arith.constant 0.00787401571 : f32
    %10 = vector.broadcast %cst_3 : f32 to vector<16x1xf32>
    %11 = arith.mulf %9, %10 : vector<16x1xf32>
    %cst_4 = arith.constant 0.000000e+00 : f32
    %12 = vector.broadcast %cst_4 : f32 to vector<16x1xf32>
    %13 = arith.maximumf %11, %12 : vector<16x1xf32>
    %cst_5 = arith.constant 9.99999997E-7 : f32
    %14 = vector.broadcast %cst_5 : f32 to vector<16x1xf32>
    %15 = arith.addf %13, %14 : vector<16x1xf32>
    %16 = math.rsqrt %15 : vector<16x1xf32>
    %c0_6 = arith.constant 0 : index
    %17 = memref.load %arg2[%c0_6] : memref<1xf32, #tpu.memory_space<smem>>
    %18 = vector.broadcast %17 : f32 to vector<16x1xf32>
    %19 = arith.mulf %16, %18 : vector<16x1xf32>
    %20 = vector.broadcast %7 : vector<16x1xf32> to vector<16x128xf32>
    %21 = arith.subf %0, %20 : vector<16x128xf32>
    %22 = vector.broadcast %19 : vector<16x1xf32> to vector<16x128xf32>
    %23 = arith.mulf %21, %22 : vector<16x128xf32>
    %c0_7 = arith.constant 0 : index
    %24 = memref.load %arg3[%c0_7] : memref<1xf32, #tpu.memory_space<smem>>
    %25 = vector.broadcast %24 : f32 to vector<16x128xf32>
    %26 = arith.addf %23, %25 : vector<16x128xf32>
    %c0_8 = arith.constant 0 : index
    %c0_9 = arith.constant 0 : index
    %27 = vector.load %arg4[%c0_8, %c0_9] : memref<16x128xf32, #tpu.memory_space<vmem>>, vector<16x128xf32>
    tpu.vector_store %arg4[%c0_8, %c0_9], %26 {strides = array<i32>} : memref<16x128xf32, #tpu.memory_space<vmem>>, vector<16x128xf32>,
    return
  }
  func.func @transform_0(%arg0: i32) -> (i32, i32) {
    %c0_i32 = arith.constant 0 : i32
    %c0_i32_0 = arith.constant 0 : i32
    return %arg0, %c0_i32 : i32, i32
  }
  func.func @transform_1(%arg0: i32) -> i32 {
    %c0_i32 = arith.constant 0 : i32
    %c0_i32_0 = arith.constant 0 : i32
    return %c0_i32 : i32
  }
  func.func @transform_2(%arg0: i32) -> i32 {
    %c0_i32 = arith.constant 0 : i32
    %c0_i32_0 = arith.constant 0 : i32
    return %c0_i32 : i32
  }
  func.func @transform_3(%arg0: i32) -> (i32, i32) {
    %c0_i32 = arith.constant 0 : i32
    %c0_i32_0 = arith.constant 0 : i32
    return %arg0, %c0_i32 : i32, i32
  }
}

</mosaic_0001>

<llo_original>
// kernel: tpu_custom_call.1
$region0: #{tpu_custom_call.1}
  #allocation0 [shape = 'u32[]', space=smem, size = 0x4, offset = 0x4, fixed_abs, tag = 'smem constant byte address 0x4 - core index']
  #allocation1 [shape = 'u32[72,128]{1,0:T(1,128)}', space=vmem, size = 0x9000, scoped, tag = 'internal scratch']
  #allocation2 [shape = 'f32[1]{0:T(128)S(6)}', space=smem, size = 0x200, scoped, tag = 'scoped memory for tpu_custom_call.1']
  #allocation3 [shape = 'f32[1]{0:T(128)S(6)}', space=smem, size = 0x200, scoped, tag = 'scoped memory for tpu_custom_call.1']
  %s0 = inlined_call_operand.hbm [shape: f32[16,128], index: 0, kind: input, shape index: {}]
  %s1 = inlined_call_operand.<no memory space> [shape: f32[1], index: 1, kind: input, shape index: {}]
  %s2 = inlined_call_operand.<no memory space> [shape: f32[1], index: 2, kind: input, shape index: {}]
  %s3 = inlined_call_operand.hbm [shape: f32[16,128], index: 3, kind: output, shape index: {}]
  %s4 = sld [smem:[#allocation0]]
  $region26: #{tpu_custom_call.1} parent=0
    _
  %s6 = ssub.s32 1, %s4
  %s7 = scalar_select 0, %s6, %s4
  %8 = sst [smem:[#allocation2]] %s1
  %9 = sst [smem:[#allocation3]] %s2
  $region1: #{tpu_custom_call.1} parent=0
    #allocation4 [shape = 'u8[8192]{0}', space=vmem, size = 0x2000, scoped, tag = 'input window, operand 0, single buffered']
    #allocation5 [shape = 's32[1]{0}', space=sflag, size = 0x4, scoped, tag = 'scoped memory for tpu_custom_call.1']
    #allocation6 [shape = 's32[1]{0}', space=sflag, size = 0x4, scoped, tag = 'scoped memory for tpu_custom_call.1']
    #allocation7 [shape = 'u8[8192]{0}', space=vmem, size = 0x2000, scoped, tag = 'output window, operand 0, single buffered']
    %10 = vsyncpa [#allocation5], 0
    %11 = vsyncpa [#allocation6], 0
    // Predicated region
    $region2: #{tpu_custom_call.1} parent=1 // pred_check
      _
    $region3: #{tpu_custom_call.1} parent=1 // pred_check_branch
      %13 = sbr.rel (0) target = $region5
    $region4: #{tpu_custom_call.1} parent=1 // pred_region
      %15 = vsyncadd [#allocation5], 0
      %s16 = sshll.u32 %s0, 4
      %s17 = int_to_ptr.hbm [resolvable:$true] %s16
      %s18 = sshll.u32 [#allocation4], 4
      %s19 = int_to_ptr.vmem [resolvable:$true] %s18
      %24 = dma.hbm_to_vmem [thread:$0]  %s17, 256, %s19, [#allocation5], 128, 128, 8
    $region5: #{tpu_custom_call.1} parent=1 // pred_fallthru
      _
    // Predicated region
    $region6: #{tpu_custom_call.1} parent=1 // pred_check
      _
    $region7: #{tpu_custom_call.1} parent=1 // pred_check_branch
      %26 = sbr.rel (0) target = $region9
    $region8: #{tpu_custom_call.1} parent=1 // pred_region
      _
    $region9: #{tpu_custom_call.1} parent=1 // pred_fallthru
      _
    // Predicated region
    $region10: #{tpu_custom_call.1} parent=1 // pred_check
      _
    $region11: #{tpu_custom_call.1} parent=1 // pred_check_branch
      %28 = sbr.rel (0) target = $region13
    $region12: #{tpu_custom_call.1} parent=1 // pred_region
      _
    $region13: #{tpu_custom_call.1} parent=1 // pred_fallthru
      _
    // Predicated region
    $region14: #{tpu_custom_call.1} parent=1 // pred_check
      _
    $region15: #{tpu_custom_call.1} parent=1 // pred_check_branch
      %30 = sbr.rel (0) target = $region17
    $region16: #{tpu_custom_call.1} parent=1 // pred_region
      %32 = dma.done [#allocation5], 256
    $region17: #{tpu_custom_call.1} parent=1 // pred_fallthru
      _
    %v33 = vld [vmem:[#allocation4] sm:$0xff]
    %v34 = vld [vmem:[#allocation4 + $0x8] sm:$0xff]
    %35 = vadd.xlane.f32.xlu0 %v33
    %v36 = vpop.xlane.xlu0 %35
    %37 = vadd.xlane.f32.xlu0 %v34
    %v38 = vpop.xlane.xlu0 %37
    %v39 = vmul.f32 %v33, %v33
    %v40 = vmul.f32 %v34, %v34
    %41 = vadd.xlane.f32.xlu0 %v39
    %v42 = vpop.xlane.xlu0 %41
    %43 = vadd.xlane.f32.xlu0 %v40
    %v44 = vpop.xlane.xlu0 %43
    %v45 = vmul.f32 %v36, 0.0078125
    %v46 = vmul.f32 %v38, 0.0078125
    %v47 = vmul.f32 %v45, %v36
    %v48 = vmul.f32 %v46, %v38
    %v49 = vsub.f32 %v42, %v47
    %v50 = vsub.f32 %v44, %v48
    %v51 = vmul.f32 %v49, 0.007874016
    %v52 = vmul.f32 %v50, 0.007874016
    %v53 = vmax.f32 %v51, 0.0
    %v54 = vmax.f32 %v52, 0.0
    %v55 = vadd.f32 %v53, 1e-06
    %v56 = vadd.f32 %v54, 1e-06
    %v57 = vrsqrt.pop %v55
    %v58 = vmul.f32 %v57, %v55
    %v59 = vmul.f32 %v58, %v57
    %v60 = vmul.f32 0.5, %v59
    %v61 = vsub.f32 1.5, %v60
    %v62 = vmul.f32 %v57, %v61
    %vm63 = vweird.f32 %v55
    %vm64 = vweird.f32 %v57
    %vm65 = vmor %vm63, %vm64
    %v66 = vsel %vm65, %v57, %v62
    %v67 = vrsqrt.pop %v56
    %v68 = vmul.f32 %v67, %v56
    %v69 = vmul.f32 %v68, %v67
    %v70 = vmul.f32 0.5, %v69
    %v71 = vsub.f32 1.5, %v70
    %v72 = vmul.f32 %v67, %v71
    %vm73 = vweird.f32 %v56
    %vm74 = vweird.f32 %v67
    %vm75 = vmor %vm73, %vm74
    %v76 = vsel %vm75, %v67, %v72
    %s77 = sld [smem:[#allocation2]]
    %v78 = vstv %s77
    %v79 = vmul.f32 %v66, %v78
    %v80 = vmul.f32 %v76, %v78
    %v81 = vsub.f32 %v33, %v45
    %v82 = vsub.f32 %v34, %v46
    %v83 = vmul.f32 %v81, %v79
    %v84 = vmul.f32 %v82, %v80
    %s85 = sld [smem:[#allocation3]]
    %v86 = vstv %s85
    %v87 = vadd.f32 %v83, %v86
    %v88 = vadd.f32 %v84, %v86
    %89 = vst [vmem:[#allocation7] sm:$0xff] %v87
    %90 = vst [vmem:[#allocation7 + $0x8] sm:$0xff] %v88
    // Predicated region
    $region18: #{tpu_custom_call.1} parent=1 // pred_check
      _
    $region19: #{tpu_custom_call.1} parent=1 // pred_check_branch
      %92 = sbr.rel (0) target = $region21
    $region20: #{tpu_custom_call.1} parent=1 // pred_region
      %94 = vsyncadd [#allocation6], 0
      %s95 = sshll.u32 [#allocation7], 4
      %s96 = int_to_ptr.vmem [resolvable:$true] %s95
      %s97 = sshll.u32 %s3, 4
      %s98 = int_to_ptr.hbm [resolvable:$true] %s97
      %103 = dma.vmem_to_hbm [thread:$0]  %s96, 256, %s98, [#allocation6], 128, 128, 8
    $region21: #{tpu_custom_call.1} parent=1 // pred_fallthru
      _
    // Predicated region
    $region22: #{tpu_custom_call.1} parent=1 // pred_check
      _
    $region23: #{tpu_custom_call.1} parent=1 // pred_check_branch
      %105 = sbr.rel (0) target = $region25
    $region24: #{tpu_custom_call.1} parent=1 // pred_region
      %107 = dma.done [#allocation6], 256
    $region25: #{tpu_custom_call.1} parent=1 // pred_fallthru
      _
    %108 = vsyncpa [#allocation5], 1
    %109 = vsyncpa [#allocation6], 1

</llo_original>
